<compile_context>
chip_gen: v5e
topology: v5e:2x2
jax: 0.10.0
libtpu: 0.0.40
codegen_flags: <defaults>
</compile_context>

<pallas_src>
import jax
import jax.numpy as jnp
from jax import lax
from jax.experimental import pallas as pl
from jax.experimental.pallas import tpu as pltpu

DEPTH = 3          # module default depth
LPAD = 8           # pad the (depth+1) basis axis to 8 sublanes


def _round_up(x, m):
    return (x + m - 1) // m * m


def _jacobi_recurrence_coefs(alphas, depth=DEPTH, a=1.0, b=1.0, l=-1.0, r=1.0):
    """Collapse JacobiConv(L, ...) into 3 scalars per level:
         B_L = c[3L+0]*(e*B_{L-1}) + c[3L+1]*B_{L-1} + c[3L+2]*B_{L-2}
       Returns a flat (3*(depth+1),) float32 array (level 0 unused)."""
    zero = jnp.zeros((), jnp.float32)
    rows = [zero, zero, zero]
    coef1 = ((a - b) / 2 - (a + b + 2) / 2 * (l + r) / (r - l)) * alphas[0]
    coef2 = ((a + b + 2) / (r - l)) * alphas[0]
    rows += [coef2, coef1, zero]
    for L in range(2, depth + 1):
        coef_l = 2 * L * (L + a + b) * (2 * L - 2 + a + b)
        coef_lm1_1 = (2 * L + a + b - 1) * (2 * L + a + b) * (2 * L + a + b - 2)
        coef_lm1_2 = (2 * L + a + b - 1) * (a ** 2 - b ** 2)
        coef_lm2 = 2 * (L - 1 + a) * (L - 1 + b) * (2 * L + a + b)
        tmp1 = alphas[L - 1] * (coef_lm1_1 / coef_l)
        tmp2 = alphas[L - 1] * (coef_lm1_2 / coef_l)
        tmp3 = alphas[L - 1] * alphas[L - 2] * (coef_lm2 / coef_l)
        tmp1_2 = tmp1 * (2 / (r - l))
        tmp2_2 = tmp1 * ((r + l) / (r - l)) + tmp2
        rows += [tmp1_2, -tmp2_2, -tmp3]
    return jnp.stack([jnp.asarray(v, jnp.float32) for v in rows])


def _jacobi_kc(coef_ref, e, utx, cw):
    """Run the Jacobi recursion in registers and contract against comb_weight.
       e, utx: (1, Kt) f32;  cw: (LPAD, C) f32  ->  (Kt, C) f32."""
    rows = [utx]                               # B_0 = ones -> B_0 * utx = utx
    prev = jnp.ones_like(e)
    prev2 = jnp.zeros_like(e)
    for L in range(1, DEPTH + 1):
        nx = (coef_ref[3 * L + 0] * (e * prev)
              + coef_ref[3 * L + 1] * prev
              + coef_ref[3 * L + 2] * prev2)
        rows.append(nx * utx)
        prev2, prev = prev, nx
    zero_row = jnp.zeros_like(utx)
    scaled = jnp.concatenate(rows + [zero_row] * (LPAD - (DEPTH + 1)), axis=0)  # (LPAD, Kt)
    # kc[k, c] = sum_L scaled[L, k] * cw[L, c]
    return lax.dot_general(scaled, cw,
                           dimension_numbers=(((0,), (0,)), ((), ())),
                           preferred_element_type=jnp.float32)


# --------------------------- fused single-launch kernel ---------------------------

def _fused_kernel(coef_ref, emb_ref, u_ref, e_ref, cw_ref, out_ref):
    # coef: SMEM (3*(DEPTH+1),); emb: (1,N) bf16; u: (N,K) bf16; e: (1,K) f32;
    # cw: (LPAD,C) f32; out: (N,C) f32.
    utx = jnp.dot(emb_ref[...], u_ref[...],
                  preferred_element_type=jnp.float32)            # (1, K) f32
    kc = _jacobi_kc(coef_ref, e_ref[...], utx, cw_ref[...])      # (K, C) f32
    out_ref[...] = jnp.dot(u_ref[...], kc.astype(jnp.bfloat16),
                           preferred_element_type=jnp.float32)   # (N, C) f32


# ----------------------------- tiled two-pass kernels -----------------------------

def _spectral_kernel(coef_ref, emb_ref, u_ref, e_ref, cw_ref, kc_ref, utx_acc):
    # grid = (nk parallel, nt arbitrary); node axis is the reduction.
    i = pl.program_id(1)

    @pl.when(i == 0)
    def _():
        utx_acc[...] = jnp.zeros_like(utx_acc)

    # utx partial sum on the MXU: (1, tn) @ (tn, tk), f32 accumulation.
    utx_acc[...] += jnp.dot(emb_ref[...], u_ref[...],
                            preferred_element_type=jnp.float32)

    @pl.when(i == pl.num_programs(1) - 1)
    def _():
        kc_ref[...] = _jacobi_kc(coef_ref, e_ref[...], utx_acc[...], cw_ref[...])


def _synthesis_kernel(u_ref, kc_ref, out_ref):
    # u: (tn, K) bf16; kc: (K, C) f32 resident; out: (tn, C) f32
    out_ref[...] = jnp.dot(u_ref[...], kc_ref[...].astype(jnp.bfloat16),
                           preferred_element_type=jnp.float32)


# ------------------------------------ wrapper -------------------------------------

def _vmem_budget():
    cap = 64 << 20                       # conservative default (v7x per-core VMEM)
    try:
        info = pltpu.get_tpu_info()
        cap_attr = getattr(info, "vmem_capacity_bytes", None)
        if cap_attr:
            cap = int(cap_attr)
    except Exception:
        pass
    # ~48 MiB on v7x (64 MiB phys), ~96 MiB on v5e/v6e (128 MiB phys).
    return max(32 << 20, cap * 3 // 4)


def _fused_vmem_need(N, K, C):
    return (2 * N * K * 2          # U bf16 (double-buffered)
            + 2 * N * 2            # emb row bf16
            + 2 * K * 4            # corrected_e
            + 2 * LPAD * C * 4     # comb weights
            + 2 * N * C * 4        # out f32
            + K * C * 4            # kc temporary
            + 16 * K * 4           # recursion temporaries
            + (6 << 20))           # compiler scratch / headroom


def _pick_tn(N, K, C, budget, max_tile_rows=None):
    cap = _round_up(N, 128)
    tn = 128
    for cand in (2048, 1024, 512, 256, 128):
        if cand > cap:
            continue
        need = (2 * cand * K * 2      # U tile bf16 double-buffered
                + 2 * K * C * 4       # kc resident (f32)
                + 2 * cand * C * 4    # out tile f32 double-buffered
                + 2 * cand * 2        # emb tile
                + (6 << 20))          # headroom
        if need <= budget:
            tn = cand
            break
    if max_tile_rows is not None:
        tn = min(tn, max(128, _round_up(int(max_tile_rows), 128)))
    return tn


def jacobi_conv_model_img_forward(corrected_e, ones, U, emb, alphas_raw,
                                  comb_weight, basealpha=1.0,
                                  force_tiled=False, max_tile_rows=None):
    del ones  # basis row 0 is a compile-time constant; built in-kernel
    N, K = U.shape
    C = comb_weight.shape[-1]

    alphas = basealpha * jnp.tanh(alphas_raw.astype(jnp.float32))
    coefs = _jacobi_recurrence_coefs(alphas)                      # (3*(DEPTH+1),) f32
    cw = comb_weight.reshape(DEPTH + 1, C).astype(jnp.float32)
    cw_pad = jnp.zeros((LPAD, C), jnp.float32).at[: DEPTH + 1].set(cw)

    u_bf16 = U.astype(jnp.bfloat16)                   # MXU-native, half the DMA bytes
    emb_row = emb.reshape(1, N).astype(jnp.bfloat16)  # lane-dense row for the MXU GEMV
    e_row = corrected_e.reshape(1, K).astype(jnp.float32)

    budget = _vmem_budget()
    smem_spec = pl.BlockSpec(memory_space=pltpu.MemorySpace.SMEM)

    def _params(dims):
        return pltpu.CompilerParams(dimension_semantics=dims,
                                    vmem_limit_bytes=budget)

    # ---------------- fused path: U read from HBM exactly once -------------------
    if (not force_tiled) and _fused_vmem_need(N, K, C) <= budget:
        return pl.pallas_call(
            _fused_kernel,
            out_shape=jax.ShapeDtypeStruct((N, C), jnp.float32),
            grid=(1,),
            in_specs=[
                smem_spec,                                        # recurrence scalars
                pl.BlockSpec((1, N), lambda i: (0, 0)),           # emb row
                pl.BlockSpec((N, K), lambda i: (0, 0)),           # U (bf16)
                pl.BlockSpec((1, K), lambda i: (0, 0)),           # corrected_e
                pl.BlockSpec((LPAD, C), lambda i: (0, 0)),        # padded comb_weight
            ],
            out_specs=pl.BlockSpec((N, C), lambda i: (0, 0)),
            compiler_params=_params(("arbitrary",)),
        )(coefs, emb_row, u_bf16, e_row, cw_pad)

    # ---------------- tiled two-pass fallback (large graphs) ---------------------
    tn = _pick_tn(N, K, C, budget, max_tile_rows)
    Np = _round_up(N, tn)
    nt = Np // tn
    if Np != N:
        u_bf16 = jnp.pad(u_bf16, ((0, Np - N), (0, 0)))
        emb_row = jnp.pad(emb_row, ((0, 0), (0, Np - N)))

    nk = 2 if (K % 256 == 0) else 1       # K-tile "parallel" axis (both v7x cores)
    tk = K // nk

    # Pass 1: utx reduction over node tiles + Jacobi recursion -> kc (f32)
    kc = pl.pallas_call(
        _spectral_kernel,
        out_shape=jax.ShapeDtypeStruct((K, C), jnp.float32),
        grid=(nk, nt),
        in_specs=[
            smem_spec,                                            # recurrence scalars
            pl.BlockSpec((1, tn), lambda k, i: (0, i)),           # emb row tile
            pl.BlockSpec((tn, tk), lambda k, i: (i, k)),          # U row/col tile
            pl.BlockSpec((1, tk), lambda k, i: (0, k)),           # corrected_e slice
            pl.BlockSpec((LPAD, C), lambda k, i: (0, 0)),         # padded comb_weight
        ],
        out_specs=pl.BlockSpec((tk, C), lambda k, i: (k, 0)),
        scratch_shapes=[pltpu.VMEM((1, tk), jnp.float32)],
        compiler_params=_params(("parallel", "arbitrary")),
    )(coefs, emb_row, u_bf16, e_row, cw_pad)

    # Pass 2: out = U @ kc, tiled over node rows, parallel across TensorCores
    out = pl.pallas_call(
        _synthesis_kernel,
        out_shape=jax.ShapeDtypeStruct((Np, C), jnp.float32),
        grid=(nt,),
        in_specs=[
            pl.BlockSpec((tn, K), lambda i: (i, 0)),              # U row tile (bf16)
            pl.BlockSpec((K, C), lambda i: (0, 0)),               # kc (f32, resident)
        ],
        out_specs=pl.BlockSpec((tn, C), lambda i: (i, 0)),
        compiler_params=_params(("parallel",)),
    )(u_bf16, kc)
    return out[:N] if Np != N else out


# ---------------- pure-JAX reference (direct port of the torch code) -----------------

def _jacobi_conv_ref(L, xs, adj, alphas, a=1.0, b=1.0, l=-1.0, r=1.0):
    if L == 0:
        return xs[0]
    if L == 1:
        coef1 = (a - b) / 2 - (a + b + 2) / 2 * (l + r) / (r - l)
        coef1 = coef1 * alphas[0]
        coef2 = (a + b + 2) / (r - l)
        coef2 = coef2 * alphas[0]
        return coef1 * xs[-1] + coef2 * (adj * xs[-1])
    coef_l = 2 * L * (L + a + b) * (2 * L - 2 + a + b)
    coef_lm1_1 = (2 * L + a + b - 1) * (2 * L + a + b) * (2 * L + a + b - 2)
    coef_lm1_2 = (2 * L + a + b - 1) * (a ** 2 - b ** 2)
    coef_lm2 = 2 * (L - 1 + a) * (L - 1 + b) * (2 * L + a + b)
    tmp1 = alphas[L - 1] * (coef_lm1_1 / coef_l)
    tmp2 = alphas[L - 1] * (coef_lm1_2 / coef_l)
    tmp3 = alphas[L - 1] * alphas[L - 2] * (coef_lm2 / coef_l)
    tmp1_2 = tmp1 * (2 / (r - l))
    tmp2_2 = tmp1 * ((r + l) / (r - l)) + tmp2
    nx = tmp1_2 * (adj * xs[-1]) - tmp2_2 * xs[-1]
    nx = nx - tmp3 * xs[-2]
    return nx


def reference_forward(corrected_e, ones, U, emb, alphas_raw, comb_weight,
                      basealpha=1.0, depth=DEPTH):
    utx = U.T @ emb                                   # (K, 1)
    alphas = [basealpha * jnp.tanh(alphas_raw[i]) for i in range(depth + 1)]
    xs = [_jacobi_conv_ref(0, [ones], corrected_e, alphas)]
    for L in range(1, depth + 1):
        xs.append(_jacobi_conv_ref(L, xs, corrected_e, alphas))
    xs = [(x[:, None] * utx)[:, None, :] for x in xs]  # each (K, 1, 1)
    x = jnp.concatenate(xs, axis=1)                    # (K, depth+1, 1)
    x = x * comb_weight                                # (K, depth+1, C)
    x = jnp.sum(x, axis=1)                             # (K, C)
    return U @ x                                       # (N, C)


if __name__ == "__main__":
    base_key = jax.random.PRNGKey(0)

    def run_case(N, K, C, F, idx, **kwargs):
        k1, k2, k3, k4, k5 = jax.random.split(jax.random.fold_in(base_key, N), 5)
        # Forward inputs (x1 / edge_index / edge_attr are unused by the torch forward).
        U = jax.random.normal(k1, (N, K), jnp.float32) / jnp.sqrt(N)
        node_features = jax.random.normal(k2, (N, F), jnp.float32)
        emb = node_features[:, idx].reshape(-1, 1)      # self.emb(): x[:, idx].reshape(-1, 1)
        corrected_e = jax.random.uniform(k3, (K,), jnp.float32, minval=-1.0, maxval=1.0)
        ones = jnp.ones((K,), jnp.float32)
        # Parameters: torch init is alphas = min(1/alpha, 1) = 1.0, comb_weight = ones;
        # small deterministic perturbations make the numerical check non-degenerate.
        basealpha = 1.0
        alphas_raw = jnp.full((DEPTH + 1,), 1.0, jnp.float32) \
            + 0.05 * jax.random.normal(k4, (DEPTH + 1,), jnp.float32)
        comb_weight = jnp.ones((1, DEPTH + 1, C), jnp.float32) \
            + 0.1 * jax.random.normal(k5, (1, DEPTH + 1, C), jnp.float32)

        out = jax.block_until_ready(
            jacobi_conv_model_img_forward(corrected_e, ones, U, emb,
                                          alphas_raw, comb_weight, basealpha, **kwargs))
        ref = jax.block_until_ready(
            reference_forward(corrected_e, ones, U, emb, alphas_raw, comb_weight, basealpha))

        assert out.shape == (N, C) and out.dtype == jnp.float32
        rel_err = float(jnp.max(jnp.abs(out - ref)) / (jnp.max(jnp.abs(ref)) + 1e-8))
        assert rel_err < 2e-2, f"relative error too large (N={N}): {rel_err}"

    # Fused single-launch path (U read once, kc never leaves VMEM).
    run_case(256, 256, 128, 4, idx=1)
    # Tiled two-pass fallback: non-divisible N (padding), multi-step utx reduction,
    # and the K-parallel axis in pass 1.
    run_case(600, 256, 128, 4, idx=1, force_tiled=True, max_tile_rows=128)

    print("KERNEL_OK")
</pallas_src>

<mosaic_0001>
module attributes {stable_mosaic.version = 11 : i64} {
  func.func @_fused_kernel(%arg0: i32, %arg1: memref<12xf32, #tpu.memory_space<smem>>, %arg2: memref<1x256xbf16, #tpu.memory_space<vmem>>, %arg3: memref<256x256xbf16, #tpu.memory_space<vmem>>, %arg4: memref<1x256xf32, #tpu.memory_space<vmem>>, %arg5: memref<8x128xf32, #tpu.memory_space<vmem>>, %arg6: memref<256x128xf32, #tpu.memory_space<vmem>>) attributes {dimension_semantics = [#tpu.dimension_semantics<arbitrary>], iteration_bounds = array<i64: 1>, scalar_prefetch = 0 : i64, scratch_operands = 0 : i64, tpu.core_type = #tpu.core_type<tc>, window_params = [{transform_indices = @transform_0, window_bounds = array<i64: 12>}, {pipeline_mode = #tpu.pipeline_mode<synchronous>, transform_indices = @transform_1, window_bounds = array<i64: 1, 256>}, {pipeline_mode = #tpu.pipeline_mode<synchronous>, transform_indices = @transform_2, window_bounds = array<i64: 256, 256>}, {pipeline_mode = #tpu.pipeline_mode<synchronous>, transform_indices = @transform_3, window_bounds = array<i64: 1, 256>}, {pipeline_mode = #tpu.pipeline_mode<synchronous>, transform_indices = @transform_4, window_bounds = array<i64: 8, 128>}, {pipeline_mode = #tpu.pipeline_mode<synchronous>, transform_indices = @transform_5, window_bounds = array<i64: 256, 128>}]} {
    %c0 = arith.constant 0 : index
    %c0_0 = arith.constant 0 : index
    %0 = vector.load %arg2[%c0, %c0_0] : memref<1x256xbf16, #tpu.memory_space<vmem>>, vector<1x256xbf16>
    %c0_1 = arith.constant 0 : index
    %c0_2 = arith.constant 0 : index
    %1 = vector.load %arg3[%c0_1, %c0_2] : memref<256x256xbf16, #tpu.memory_space<vmem>>, vector<256x256xbf16>
    %cst = arith.constant dense<0.000000e+00> : vector<1x256xf32>
    %2 = tpu.matmul %0, %1, %cst {dimension_numbers = #tpu.dot_dimension_numbers<[1], [0], [0], [1], [0, 0, 1, 1], [], []>} : vector<1x256xbf16>, vector<256x256xbf16>, vector<1x256xf32> -> vector<1x256xf32>
    %c0_3 = arith.constant 0 : index
    %c0_4 = arith.constant 0 : index
    %3 = vector.load %arg4[%c0_3, %c0_4] : memref<1x256xf32, #tpu.memory_space<vmem>>, vector<1x256xf32>
    %c0_5 = arith.constant 0 : index
    %c0_6 = arith.constant 0 : index
    %4 = vector.load %arg5[%c0_5, %c0_6] : memref<8x128xf32, #tpu.memory_space<vmem>>, vector<8x128xf32>
    %cst_7 = arith.constant 1.000000e+00 : f32
    %5 = vector.broadcast %cst_7 : f32 to vector<1x256xf32>
    %cst_8 = arith.constant 0.000000e+00 : f32
    %6 = vector.broadcast %cst_8 : f32 to vector<1x256xf32>
    %c3 = arith.constant 3 : index
    %7 = memref.load %arg1[%c3] : memref<12xf32, #tpu.memory_space<smem>>
    %8 = arith.mulf %3, %5 : vector<1x256xf32>
    %9 = vector.broadcast %7 : f32 to vector<1x256xf32>
    %10 = arith.mulf %9, %8 : vector<1x256xf32>
    %c4 = arith.constant 4 : index
    %11 = memref.load %arg1[%c4] : memref<12xf32, #tpu.memory_space<smem>>
    %12 = vector.broadcast %11 : f32 to vector<1x256xf32>
    %13 = arith.mulf %12, %5 : vector<1x256xf32>
    %14 = arith.addf %10, %13 : vector<1x256xf32>
    %c5 = arith.constant 5 : index
    %15 = memref.load %arg1[%c5] : memref<12xf32, #tpu.memory_space<smem>>
    %16 = vector.broadcast %15 : f32 to vector<1x256xf32>
    %17 = arith.mulf %16, %6 : vector<1x256xf32>
    %18 = arith.addf %14, %17 : vector<1x256xf32>
    %19 = arith.mulf %18, %2 : vector<1x256xf32>
    %c6 = arith.constant 6 : index
    %20 = memref.load %arg1[%c6] : memref<12xf32, #tpu.memory_space<smem>>
    %21 = arith.mulf %3, %18 : vector<1x256xf32>
    %22 = vector.broadcast %20 : f32 to vector<1x256xf32>
    %23 = arith.mulf %22, %21 : vector<1x256xf32>
    %c7 = arith.constant 7 : index
    %24 = memref.load %arg1[%c7] : memref<12xf32, #tpu.memory_space<smem>>
    %25 = vector.broadcast %24 : f32 to vector<1x256xf32>
    %26 = arith.mulf %25, %18 : vector<1x256xf32>
    %27 = arith.addf %23, %26 : vector<1x256xf32>
    %c8 = arith.constant 8 : index
    %28 = memref.load %arg1[%c8] : memref<12xf32, #tpu.memory_space<smem>>
    %29 = vector.broadcast %28 : f32 to vector<1x256xf32>
    %30 = arith.mulf %29, %5 : vector<1x256xf32>
    %31 = arith.addf %27, %30 : vector<1x256xf32>
    %32 = arith.mulf %31, %2 : vector<1x256xf32>
    %c9 = arith.constant 9 : index
    %33 = memref.load %arg1[%c9] : memref<12xf32, #tpu.memory_space<smem>>
    %34 = arith.mulf %3, %31 : vector<1x256xf32>
    %35 = vector.broadcast %33 : f32 to vector<1x256xf32>
    %36 = arith.mulf %35, %34 : vector<1x256xf32>
    %c10 = arith.constant 10 : index
    %37 = memref.load %arg1[%c10] : memref<12xf32, #tpu.memory_space<smem>>
    %38 = vector.broadcast %37 : f32 to vector<1x256xf32>
    %39 = arith.mulf %38, %31 : vector<1x256xf32>
    %40 = arith.addf %36, %39 : vector<1x256xf32>
    %c11 = arith.constant 11 : index
    %41 = memref.load %arg1[%c11] : memref<12xf32, #tpu.memory_space<smem>>
    %42 = vector.broadcast %41 : f32 to vector<1x256xf32>
    %43 = arith.mulf %42, %18 : vector<1x256xf32>
    %44 = arith.addf %40, %43 : vector<1x256xf32>
    %45 = arith.mulf %44, %2 : vector<1x256xf32>
    %cst_9 = arith.constant 0.000000e+00 : f32
    %46 = vector.broadcast %cst_9 : f32 to vector<1x256xf32>
    %47 = tpu.concatenate %2, %19, %32, %45, %46, %46, %46, %46 in 0 : vector<1x256xf32>, vector<1x256xf32>, vector<1x256xf32>, vector<1x256xf32>, vector<1x256xf32>, vector<1x256xf32>, vector<1x256xf32>, vector<1x256xf32> -> vector<8x256xf32>
    %cst_10 = arith.constant dense<0.000000e+00> : vector<256x128xf32>
    %48 = tpu.matmul %47, %4, %cst_10 {dimension_numbers = #tpu.dot_dimension_numbers<[0], [0], [1], [1], [0, 1, 1, 1], [], []>} : vector<8x256xf32>, vector<8x128xf32>, vector<256x128xf32> -> vector<256x128xf32>
    %c0_11 = arith.constant 0 : index
    %c0_12 = arith.constant 0 : index
    %49 = vector.load %arg3[%c0_11, %c0_12] : memref<256x256xbf16, #tpu.memory_space<vmem>>, vector<256x256xbf16>
    %50 = arith.truncf %48 : vector<256x128xf32> to vector<256x128xbf16>
    %cst_13 = arith.constant dense<0.000000e+00> : vector<256x128xf32>
    %51 = tpu.matmul %49, %50, %cst_13 {dimension_numbers = #tpu.dot_dimension_numbers<[1], [0], [0], [1], [0, 0, 1, 1], [], []>} : vector<256x256xbf16>, vector<256x128xbf16>, vector<256x128xf32> -> vector<256x128xf32>
    %c0_14 = arith.constant 0 : index
    %c0_15 = arith.constant 0 : index
    %52 = vector.load %arg6[%c0_14, %c0_15] : memref<256x128xf32, #tpu.memory_space<vmem>>, vector<256x128xf32>
    tpu.vector_store %arg6[%c0_14, %c0_15], %51 {strides = array<i32>} : memref<256x128xf32, #tpu.memory_space<vmem>>, vector<256x128xf32>,
    return
  }
  func.func @transform_0(%arg0: i32) -> i32 {
    %c0_i32 = arith.constant 0 : i32
    %c0_i32_0 = arith.constant 0 : i32
    return %c0_i32 : i32
  }
  func.func @transform_1(%arg0: i32) -> (i32, i32) {
    %c0_i32 = arith.constant 0 : i32
    %c0_i32_0 = arith.constant 0 : i32
    %c0_i32_1 = arith.constant 0 : i32
    return %c0_i32, %c0_i32_0 : i32, i32
  }
  func.func @transform_2(%arg0: i32) -> (i32, i32) {
    %c0_i32 = arith.constant 0 : i32
    %c0_i32_0 = arith.constant 0 : i32
    %c0_i32_1 = arith.constant 0 : i32
    return %c0_i32, %c0_i32_0 : i32, i32
  }
  func.func @transform_3(%arg0: i32) -> (i32, i32) {
    %c0_i32 = arith.constant 0 : i32
    %c0_i32_0 = arith.constant 0 : i32
    %c0_i32_1 = arith.constant 0 : i32
    return %c0_i32, %c0_i32_0 : i32, i32
  }
  func.func @transform_4(%arg0: i32) -> (i32, i32) {
    %c0_i32 = arith.constant 0 : i32
    %c0_i32_0 = arith.constant 0 : i32
    %c0_i32_1 = arith.constant 0 : i32
    return %c0_i32, %c0_i32_0 : i32, i32
  }
  func.func @transform_5(%arg0: i32) -> (i32, i32) {
    %c0_i32 = arith.constant 0 : i32
    %c0_i32_0 = arith.constant 0 : i32
    %c0_i32_1 = arith.constant 0 : i32
    return %c0_i32, %c0_i32_0 : i32, i32
  }
}

</mosaic_0001>

<llo_original>
// kernel: tpu_custom_call.1
$region0: #{tpu_custom_call.1}
  #allocation0 [shape = 'u32[]', space=smem, size = 0x4, offset = 0x4, fixed_abs, tag = 'smem constant byte address 0x4 - core index']
  #allocation1 [shape = 'u32[72,128]{1,0:T(1,128)}', space=vmem, size = 0x9000, scoped, tag = 'internal scratch']
  %s0 = inlined_call_operand.hbm [shape: f32[12], index: 0, kind: input, shape index: {}]
  %s1 = inlined_call_operand.hbm [shape: bf16[1,256], index: 1, kind: input, shape index: {}]
  %s2 = inlined_call_operand.hbm [shape: bf16[256,256], index: 2, kind: input, shape index: {}]
  %s3 = inlined_call_operand.vmem [shape: f32[1,256], index: 3, kind: input, shape index: {}]
  %s4 = inlined_call_operand.hbm [shape: f32[8,128], index: 4, kind: input, shape index: {}]
  %s5 = inlined_call_operand.hbm [shape: f32[256,128], index: 5, kind: output, shape index: {}]
  %s6 = sld [smem:[#allocation0]]
  $region46: #{tpu_custom_call.1} parent=0
    _
  %s8 = ssub.s32 1, %s6
  %s9 = scalar_select 0, %s8, %s6
  $region1: #{tpu_custom_call.1} parent=0
    #allocation2 [shape = 'u8[512]{0}', space=smem, size = 0x200, scoped, tag = 'input window, operand 0, single buffered']
    #allocation3 [shape = 's32[1]{0}', space=sflag, size = 0x4, scoped, tag = 'scoped memory for tpu_custom_call.1']
    #allocation4 [shape = 's32[1]{0}', space=sflag, size = 0x4, scoped, tag = 'scoped memory for tpu_custom_call.1']
    #allocation5 [shape = 's32[1]{0}', space=sflag, size = 0x4, scoped, tag = 'scoped memory for tpu_custom_call.1']
    #allocation6 [shape = 'u8[1024]{0}', space=vmem, size = 0x400, scoped, tag = 'input window, operand 1, single buffered']
    #allocation7 [shape = 'u8[131072]{0}', space=vmem, size = 0x20000, scoped, tag = 'input window, operand 2, single buffered']
    #allocation8 [shape = 's32[1]{0}', space=sflag, size = 0x4, scoped, tag = 'scoped memory for tpu_custom_call.1']
    #allocation9 [shape = 'u8[4096]{0}', space=vmem, size = 0x1000, scoped, tag = 'input window, operand 4, single buffered']
    #allocation10 [shape = 'u8[131072]{0}', space=vmem, size = 0x20000, scoped, tag = 'output window, operand 0, single buffered']
    %10 = vsyncpa [#allocation5], 0
    %11 = vsyncpa [#allocation3], 0
    %12 = vsyncpa [#allocation8], 0
    %13 = vsyncpa [#allocation4], 0
    // Predicated region
    $region2: #{tpu_custom_call.1} parent=1 // pred_check
      _
    $region3: #{tpu_custom_call.1} parent=1 // pred_check_branch
      %15 = sbr.rel (0) target = $region5
    $region4: #{tpu_custom_call.1} parent=1 // pred_region
      %17 = vsyncadd [#allocation5], 0
      %s19 = sshll.u32 %s0, 4
      %s20 = int_to_ptr.hbm [resolvable:$true] %s19
      %22 = dma.hbm_to_smem %s20, 16, [#allocation2], [#allocation5]
    $region5: #{tpu_custom_call.1} parent=1 // pred_fallthru
      _
    // Predicated region
    $region6: #{tpu_custom_call.1} parent=1 // pred_check
      _
    $region7: #{tpu_custom_call.1} parent=1 // pred_check_branch
      %24 = sbr.rel (0) target = $region9
    $region8: #{tpu_custom_call.1} parent=1 // pred_region
      %26 = vsyncadd [#allocation3], 0
      %s28 = sshll.u32 %s1, 4
      %s29 = int_to_ptr.hbm [resolvable:$true] %s28
      %s30 = sshll.u32 [#allocation6], 4
      %s31 = int_to_ptr.vmem [resolvable:$true] %s30
      %33 = dma.hbm_to_vmem [thread:$0]  %s29, 32, %s31, [#allocation3]
    $region9: #{tpu_custom_call.1} parent=1 // pred_fallthru
      _
    // Predicated region
    $region10: #{tpu_custom_call.1} parent=1 // pred_check
      _
    $region11: #{tpu_custom_call.1} parent=1 // pred_check_branch
      %35 = sbr.rel (0) target = $region13
    $region12: #{tpu_custom_call.1} parent=1 // pred_region
      %37 = vsyncadd [#allocation8], 0
      %s38 = sshll.u32 %s2, 4
      %s39 = int_to_ptr.hbm [resolvable:$true] %s38
      %s40 = sshll.u32 [#allocation7], 4
      %s41 = int_to_ptr.vmem [resolvable:$true] %s40
      %46 = dma.hbm_to_vmem [thread:$0]  %s39, 4096, %s41, [#allocation8], 128, 128, 8
    $region13: #{tpu_custom_call.1} parent=1 // pred_fallthru
      _
    // Predicated region
    $region14: #{tpu_custom_call.1} parent=1 // pred_check
      _
    $region15: #{tpu_custom_call.1} parent=1 // pred_check_branch
      %48 = sbr.rel (0) target = $region17
    $region16: #{tpu_custom_call.1} parent=1 // pred_region
      _
    $region17: #{tpu_custom_call.1} parent=1 // pred_fallthru
      _
    // Predicated region
    $region18: #{tpu_custom_call.1} parent=1 // pred_check
      _
    $region19: #{tpu_custom_call.1} parent=1 // pred_check_branch
      %50 = sbr.rel (0) target = $region21
    $region20: #{tpu_custom_call.1} parent=1 // pred_region
      %52 = vsyncadd [#allocation8], 0
      %s54 = sshll.u32 %s4, 4
      %s55 = int_to_ptr.hbm [resolvable:$true] %s54
      %s56 = sshll.u32 [#allocation9], 4
      %s57 = int_to_ptr.vmem [resolvable:$true] %s56
      %59 = dma.hbm_to_vmem [thread:$0]  %s55, 128, %s57, [#allocation8]
    $region21: #{tpu_custom_call.1} parent=1 // pred_fallthru
      _
    // Predicated region
    $region22: #{tpu_custom_call.1} parent=1 // pred_check
      _
    $region23: #{tpu_custom_call.1} parent=1 // pred_check_branch
      %61 = sbr.rel (0) target = $region25
    $region24: #{tpu_custom_call.1} parent=1 // pred_region
      %63 = dma.done [#allocation5], 16
    $region25: #{tpu_custom_call.1} parent=1 // pred_fallthru
      _
    // Predicated region
    $region26: #{tpu_custom_call.1} parent=1 // pred_check
      _
    $region27: #{tpu_custom_call.1} parent=1 // pred_check_branch
      %65 = sbr.rel (0) target = $region29
    $region28: #{tpu_custom_call.1} parent=1 // pred_region
      %67 = dma.done [#allocation3], 32
    $region29: #{tpu_custom_call.1} parent=1 // pred_fallthru
      _
    // Predicated region
    $region30: #{tpu_custom_call.1} parent=1 // pred_check
      _
    $region31: #{tpu_custom_call.1} parent=1 // pred_check_branch
      %69 = sbr.rel (0) target = $region33
    $region32: #{tpu_custom_call.1} parent=1 // pred_region
      %71 = dma.done [#allocation8], 4096
    $region33: #{tpu_custom_call.1} parent=1 // pred_fallthru
      _
    // Predicated region
    $region34: #{tpu_custom_call.1} parent=1 // pred_check
      _
    $region35: #{tpu_custom_call.1} parent=1 // pred_check_branch
      %73 = sbr.rel (0) target = $region37
    $region36: #{tpu_custom_call.1} parent=1 // pred_region
      %75 = dma.done [#allocation8], 128
    $region37: #{tpu_custom_call.1} parent=1 // pred_fallthru
      _
    %76 = sfence
    %v77 = vld [vmem:[#allocation6] sm:$0x3]
    %v78 = vld [vmem:[#allocation7] sm:$0xff]
    %v79 = vld [vmem:[#allocation7 + $0x8] sm:$0xff]
    %v80 = vld [vmem:[#allocation7 + $0x10] sm:$0xff]
    %v81 = vld [vmem:[#allocation7 + $0x18] sm:$0xff]
    %v82 = vld [vmem:[#allocation7 + $0x20] sm:$0xff]
    %v83 = vld [vmem:[#allocation7 + $0x28] sm:$0xff]
    %v84 = vld [vmem:[#allocation7 + $0x30] sm:$0xff]
    %v85 = vld [vmem:[#allocation7 + $0x38] sm:$0xff]
    %v86 = vld [vmem:[#allocation7 + $0x40] sm:$0xff]
    %v87 = vld [vmem:[#allocation7 + $0x48] sm:$0xff]
    %v88 = vld [vmem:[#allocation7 + $0x50] sm:$0xff]
    %v89 = vld [vmem:[#allocation7 + $0x58] sm:$0xff]
    %v90 = vld [vmem:[#allocation7 + $0x60] sm:$0xff]
    %v91 = vld [vmem:[#allocation7 + $0x68] sm:$0xff]
    %v92 = vld [vmem:[#allocation7 + $0x70] sm:$0xff]
    %v93 = vld [vmem:[#allocation7 + $0x78] sm:$0xff]
    %v94 = vld [vmem:[#allocation7 + $0x80] sm:$0xff]
    %v95 = vld [vmem:[#allocation7 + $0x88] sm:$0xff]
    %v96 = vld [vmem:[#allocation7 + $0x90] sm:$0xff]
    %v97 = vld [vmem:[#allocation7 + $0x98] sm:$0xff]
    %v98 = vld [vmem:[#allocation7 + $0xa0] sm:$0xff]
    %v99 = vld [vmem:[#allocation7 + $0xa8] sm:$0xff]
    %v100 = vld [vmem:[#allocation7 + $0xb0] sm:$0xff]
    %v101 = vld [vmem:[#allocation7 + $0xb8] sm:$0xff]
    %v102 = vld [vmem:[#allocation7 + $0xc0] sm:$0xff]
    %v103 = vld [vmem:[#allocation7 + $0xc8] sm:$0xff]
    %v104 = vld [vmem:[#allocation7 + $0xd0] sm:$0xff]
    %v105 = vld [vmem:[#allocation7 + $0xd8] sm:$0xff]
    %v106 = vld [vmem:[#allocation7 + $0xe0] sm:$0xff]
    %v107 = vld [vmem:[#allocation7 + $0xe8] sm:$0xff]
    %v108 = vld [vmem:[#allocation7 + $0xf0] sm:$0xff]
    %v109 = vld [vmem:[#allocation7 + $0xf8] sm:$0xff]
    %111 = vst [vmem:[#allocation1] ss:$9 sm:$0xff] %v77
    %v112 = vld [vmem:[#allocation1] sm:$0xff]
    %v113 = vld [vmem:[#allocation1 + $0x9] sm:$0xff]
    %v148 = vunpack.c.l.b16 %v78
    %v149 = vunpack.c.h.b16 %v78
    %v150 = vunpack.c.l.b16 %v79
    %v151 = vunpack.c.h.b16 %v79
    %v152 = vunpack.c.l.b16 %v80
    %v153 = vunpack.c.h.b16 %v80
    %v154 = vunpack.c.l.b16 %v81
    %v155 = vunpack.c.h.b16 %v81
    %v156 = vunpack.c.l.b16 %v82
    %v157 = vunpack.c.h.b16 %v82
    %v158 = vunpack.c.l.b16 %v83
    %v159 = vunpack.c.h.b16 %v83
    %v160 = vunpack.c.l.b16 %v84
    %v161 = vunpack.c.h.b16 %v84
    %v162 = vunpack.c.l.b16 %v85
    %v163 = vunpack.c.h.b16 %v85
    %v164 = vunpack.c.l.b16 %v86
    %v165 = vunpack.c.h.b16 %v86
    %v166 = vunpack.c.l.b16 %v87
    %v167 = vunpack.c.h.b16 %v87
    %v168 = vunpack.c.l.b16 %v88
    %v169 = vunpack.c.h.b16 %v88
    %v170 = vunpack.c.l.b16 %v89
    %v171 = vunpack.c.h.b16 %v89
    %v172 = vunpack.c.l.b16 %v90
    %v173 = vunpack.c.h.b16 %v90
    %v174 = vunpack.c.l.b16 %v91
    %v175 = vunpack.c.h.b16 %v91
    %v176 = vunpack.c.l.b16 %v92
    %v177 = vunpack.c.h.b16 %v92
    %v178 = vunpack.c.l.b16 %v93
    %v179 = vunpack.c.h.b16 %v93
    %v180 = vunpack.c.l.b16 %v94
    %v181 = vunpack.c.h.b16 %v94
    %v182 = vunpack.c.l.b16 %v95
    %v183 = vunpack.c.h.b16 %v95
    %v184 = vunpack.c.l.b16 %v96
    %v185 = vunpack.c.h.b16 %v96
    %v186 = vunpack.c.l.b16 %v97
    %v187 = vunpack.c.h.b16 %v97
    %v188 = vunpack.c.l.b16 %v98
    %v189 = vunpack.c.h.b16 %v98
    %v190 = vunpack.c.l.b16 %v99
    %v191 = vunpack.c.h.b16 %v99
    %v192 = vunpack.c.l.b16 %v100
    %v193 = vunpack.c.h.b16 %v100
    %v194 = vunpack.c.l.b16 %v101
    %v195 = vunpack.c.h.b16 %v101
    %v196 = vunpack.c.l.b16 %v102
    %v197 = vunpack.c.h.b16 %v102
    %v198 = vunpack.c.l.b16 %v103
    %v199 = vunpack.c.h.b16 %v103
    %v200 = vunpack.c.l.b16 %v104
    %v201 = vunpack.c.h.b16 %v104
    %v202 = vunpack.c.l.b16 %v105
    %v203 = vunpack.c.h.b16 %v105
    %v204 = vunpack.c.l.b16 %v106
    %v205 = vunpack.c.h.b16 %v106
    %v206 = vunpack.c.l.b16 %v107
    %v207 = vunpack.c.h.b16 %v107
    %v208 = vunpack.c.l.b16 %v108
    %v209 = vunpack.c.h.b16 %v108
    %v210 = vunpack.c.l.b16 %v109
    %v211 = vunpack.c.h.b16 %v109
    %v212 = vpack.c.b16 %v150, %v148
    %v213 = vpack.c.b16 %v151, %v149
    %v214 = vpack.c.b16 %v154, %v152
    %v215 = vpack.c.b16 %v155, %v153
    %v216 = vpack.c.b16 %v158, %v156
    %v217 = vpack.c.b16 %v159, %v157
    %v218 = vpack.c.b16 %v162, %v160
    %v219 = vpack.c.b16 %v163, %v161
    %v220 = vpack.c.b16 %v166, %v164
    %v221 = vpack.c.b16 %v167, %v165
    %v222 = vpack.c.b16 %v170, %v168
    %v223 = vpack.c.b16 %v171, %v169
    %v224 = vpack.c.b16 %v174, %v172
    %v225 = vpack.c.b16 %v175, %v173
    %v226 = vpack.c.b16 %v178, %v176
    %v227 = vpack.c.b16 %v179, %v177
    %v228 = vpack.c.b16 %v182, %v180
    %v229 = vpack.c.b16 %v183, %v181
    %v230 = vpack.c.b16 %v186, %v184
    %v231 = vpack.c.b16 %v187, %v185
    %v232 = vpack.c.b16 %v190, %v188
    %v233 = vpack.c.b16 %v191, %v189
    %v234 = vpack.c.b16 %v194, %v192
    %v235 = vpack.c.b16 %v195, %v193
    %v236 = vpack.c.b16 %v198, %v196
    %v237 = vpack.c.b16 %v199, %v197
    %v238 = vpack.c.b16 %v202, %v200
    %v239 = vpack.c.b16 %v203, %v201
    %v240 = vpack.c.b16 %v206, %v204
    %v241 = vpack.c.b16 %v207, %v205
    %v242 = vpack.c.b16 %v210, %v208
    %v243 = vpack.c.b16 %v211, %v209
    %276 = vmatpush.bf16.msra.mxu0 %v226
    %277 = vmatpush.bf16.msra.mxu0 %v224
    %278 = vmatpush.bf16.msra.mxu0 %v222
    %279 = vmatpush.bf16.msra.mxu0 %v220
    %280 = vmatpush.bf16.msra.mxu0 %v218
    %281 = vmatpush.bf16.msra.mxu0 %v216
    %282 = vmatpush.bf16.msra.mxu0 %v214
    %283 = vmatpush.bf16.msra.mxu0 %v212
    %284 = vmatmul.bf16.gmra.mxu0 %v112
    %v285 = vpop.f32.mrf.mxu0
    %v286 = vadd.f32 0.0, %v285
    %v287 = vpop.f32.mrf.mxu0
    %288 = vdwg.mxu0
    %289 = vmatpush.bf16.msra.mxu0 %v242
    %290 = vmatpush.bf16.msra.mxu0 %v240
    %291 = vmatpush.bf16.msra.mxu0 %v238
    %292 = vmatpush.bf16.msra.mxu0 %v236
    %293 = vmatpush.bf16.msra.mxu0 %v234
    %294 = vmatpush.bf16.msra.mxu0 %v232
    %295 = vmatpush.bf16.msra.mxu0 %v230
    %296 = vmatpush.bf16.msra.mxu0 %v228
    %297 = vmatmul.bf16.gmra.mxu0 %v113
    %v298 = vpop.f32.mrf.mxu0
    %v299 = vadd.f32 %v286, %v298
    %v300 = vpop.f32.mrf.mxu0
    %301 = vdwg.mxu0
    %302 = vmatpush.bf16.msra.mxu0 %v227
    %303 = vmatpush.bf16.msra.mxu0 %v225
    %304 = vmatpush.bf16.msra.mxu0 %v223
    %305 = vmatpush.bf16.msra.mxu0 %v221
    %306 = vmatpush.bf16.msra.mxu0 %v219
    %307 = vmatpush.bf16.msra.mxu0 %v217
    %308 = vmatpush.bf16.msra.mxu0 %v215
    %309 = vmatpush.bf16.msra.mxu0 %v213
    %310 = vmatmul.bf16.gmra.mxu0 %v112
    %v311 = vpop.f32.mrf.mxu0
    %v312 = vadd.f32 0.0, %v311
    %v313 = vpop.f32.mrf.mxu0
    %314 = vdwg.mxu0
    %315 = vmatpush.bf16.msra.mxu0 %v243
    %316 = vmatpush.bf16.msra.mxu0 %v241
    %317 = vmatpush.bf16.msra.mxu0 %v239
    %318 = vmatpush.bf16.msra.mxu0 %v237
    %319 = vmatpush.bf16.msra.mxu0 %v235
    %320 = vmatpush.bf16.msra.mxu0 %v233
    %321 = vmatpush.bf16.msra.mxu0 %v231
    %322 = vmatpush.bf16.msra.mxu0 %v229
    %323 = vmatmul.bf16.gmra.mxu0 %v113
    %v324 = vpop.f32.mrf.mxu0
    %v325 = vadd.f32 %v312, %v324
    %v326 = vpop.f32.mrf.mxu0
    %327 = vdwg.mxu0
    %v328 = vld [vmem:[%s3] sm:$0x3]
    %v329 = vld [vmem:[#allocation9] sm:$0xff]
    %s330 = sld [smem:[#allocation2 + $0x3]]
    %v331 = vstv %s330
    %v332 = vmul.f32 %v331, %v328
    %s333 = sld [smem:[#allocation2 + $0x4]]
    %v334 = vstv %s333
    %v335 = vadd.f32 %v332, %v334
    %s336 = sld [smem:[#allocation2 + $0x5]]
    %v337 = vstv %s336
    %v338 = vmul.f32 %v337, 0.0
    %v339 = vadd.f32 %v335, %v338
    %v342 = vrot.slane %v325, 7
    %vm343 = vcmask 1040384
    %v344 = vsel %vm343, %v299, %v342
    %v346 = vmul.f32 %v339, %v344
    %s347 = sld [smem:[#allocation2 + $0x6]]
    %v348 = vmul.f32 %v328, %v339
    %v349 = vstv %s347
    %v350 = vmul.f32 %v349, %v348
    %s351 = sld [smem:[#allocation2 + $0x7]]
    %v352 = vstv %s351
    %v353 = vmul.f32 %v352, %v339
    %v354 = vadd.f32 %v350, %v353
    %s355 = sld [smem:[#allocation2 + $0x8]]
    %v356 = vstv %s355
    %v357 = vadd.f32 %v354, %v356
    %v358 = vmul.f32 %v357, %v344
    %s359 = sld [smem:[#allocation2 + $0x9]]
    %v360 = vmul.f32 %v328, %v357
    %v361 = vstv %s359
    %v362 = vmul.f32 %v361, %v360
    %s363 = sld [smem:[#allocation2 + $0xa]]
    %v364 = vstv %s363
    %v365 = vmul.f32 %v364, %v357
    %v366 = vadd.f32 %v362, %v365
    %s367 = sld [smem:[#allocation2 + $0xb]]
    %v368 = vstv %s367
    %v369 = vmul.f32 %v368, %v339
    %v370 = vadd.f32 %v366, %v369
    %v371 = vmul.f32 %v370, %v344
    %v373 = vperm.slane %v346, 0
    %v374 = vperm.slane %v346, 1
    %v378 = vperm.slane %v358, 0
    %v379 = vperm.slane %v358, 1
    %v383 = vperm.slane %v371, 0
    %v384 = vperm.slane %v371, 1
    %v387 = vsel %vm343, %v299, %v373
    %v388 = vsel %vm343, %v325, %v374
    %vm389 = vcmask 1041408
    %v390 = vsel %vm389, %v387, %v378
    %v391 = vsel %vm389, %v388, %v379
    %vm392 = vcmask 1042432
    %v393 = vsel %vm392, %v390, %v383
    %v394 = vsel %vm392, %v391, %v384
    %vm395 = vcmask 1043456
    %v396 = vsel %vm395, %v393, 0.0
    %v397 = vsel %vm395, %v394, 0.0
    %vm398 = vcmask 1044480
    %v399 = vsel %vm398, %v396, 0.0
    %v400 = vsel %vm398, %v397, 0.0
    %vm401 = vcmask 1045504
    %v402 = vsel %vm401, %v399, 0.0
    %v403 = vsel %vm401, %v400, 0.0
    %vm404 = vcmask 1046528
    %v405 = vsel %vm404, %v402, 0.0
    %v406 = vsel %vm404, %v403, 0.0
    %407 = vxpose.xlu0.b32.start [1/16] %v405, 128
    %408 = vxpose.xlu0.b32.cont [2/16] 0.0, 128
    %409 = vxpose.xlu0.b32.cont [3/16] 0.0, 128
    %410 = vxpose.xlu0.b32.cont [4/16] 0.0, 128
    %411 = vxpose.xlu0.b32.cont [5/16] 0.0, 128
    %412 = vxpose.xlu0.b32.cont [6/16] 0.0, 128
    %413 = vxpose.xlu0.b32.cont [7/16] 0.0, 128
    %414 = vxpose.xlu0.b32.cont [8/16] 0.0, 128
    %415 = vxpose.xlu0.b32.cont [9/16] 0.0, 128
    %416 = vxpose.xlu0.b32.cont [10/16] 0.0, 128
    %417 = vxpose.xlu0.b32.cont [11/16] 0.0, 128
    %418 = vxpose.xlu0.b32.cont [12/16] 0.0, 128
    %419 = vxpose.xlu0.b32.cont [13/16] 0.0, 128
    %420 = vxpose.xlu0.b32.cont [14/16] 0.0, 128
    %421 = vxpose.xlu0.b32.cont [15/16] 0.0, 128
    %422 = vxpose.xlu0.b32.end [16/16] 0.0, 128
    %v423 = vpop.trf.xlu0
    %v424 = vpop.trf.xlu0
    %v425 = vpop.trf.xlu0
    %v426 = vpop.trf.xlu0
    %v427 = vpop.trf.xlu0
    %v428 = vpop.trf.xlu0
    %v429 = vpop.trf.xlu0
    %v430 = vpop.trf.xlu0
    %v431 = vpop.trf.xlu0
    %v432 = vpop.trf.xlu0
    %v433 = vpop.trf.xlu0
    %v434 = vpop.trf.xlu0
    %v435 = vpop.trf.xlu0
    %v436 = vpop.trf.xlu0
    %v437 = vpop.trf.xlu0
    %v438 = vpop.trf.xlu0
    %439 = vxpose.xlu0.b32.start [1/16] %v406, 128
    %440 = vxpose.xlu0.b32.cont [2/16] 0.0, 128
    %441 = vxpose.xlu0.b32.cont [3/16] 0.0, 128
    %442 = vxpose.xlu0.b32.cont [4/16] 0.0, 128
    %443 = vxpose.xlu0.b32.cont [5/16] 0.0, 128
    %444 = vxpose.xlu0.b32.cont [6/16] 0.0, 128
    %445 = vxpose.xlu0.b32.cont [7/16] 0.0, 128
    %446 = vxpose.xlu0.b32.cont [8/16] 0.0, 128
    %447 = vxpose.xlu0.b32.cont [9/16] 0.0, 128
    %448 = vxpose.xlu0.b32.cont [10/16] 0.0, 128
    %449 = vxpose.xlu0.b32.cont [11/16] 0.0, 128
    %450 = vxpose.xlu0.b32.cont [12/16] 0.0, 128
    %451 = vxpose.xlu0.b32.cont [13/16] 0.0, 128
    %452 = vxpose.xlu0.b32.cont [14/16] 0.0, 128
    %453 = vxpose.xlu0.b32.cont [15/16] 0.0, 128
    %454 = vxpose.xlu0.b32.end [16/16] 0.0, 128
    %v455 = vpop.trf.xlu0
    %v456 = vpop.trf.xlu0
    %v457 = vpop.trf.xlu0
    %v458 = vpop.trf.xlu0
    %v459 = vpop.trf.xlu0
    %v460 = vpop.trf.xlu0
    %v461 = vpop.trf.xlu0
    %v462 = vpop.trf.xlu0
    %v463 = vpop.trf.xlu0
    %v464 = vpop.trf.xlu0
    %v465 = vpop.trf.xlu0
    %v466 = vpop.trf.xlu0
    %v467 = vpop.trf.xlu0
    %v468 = vpop.trf.xlu0
    %v469 = vpop.trf.xlu0
    %v470 = vpop.trf.xlu0
    %vm471 = vcmask 64512
    %v473 = vsel %vm471, %v423, 0
    %v476 = vsel %vm471, %v424, 0
    %v479 = vsel %vm471, %v425, 0
    %v482 = vsel %vm471, %v426, 0
    %v485 = vsel %vm471, %v427, 0
    %v488 = vsel %vm471, %v428, 0
    %v491 = vsel %vm471, %v429, 0
    %v494 = vsel %vm471, %v430, 0
    %v497 = vsel %vm471, %v431, 0
    %v500 = vsel %vm471, %v432, 0
    %v503 = vsel %vm471, %v433, 0
    %v506 = vsel %vm471, %v434, 0
    %v509 = vsel %vm471, %v435, 0
    %v512 = vsel %vm471, %v436, 0
    %v515 = vsel %vm471, %v437, 0
    %v518 = vsel %vm471, %v438, 0
    %v521 = vsel %vm471, %v455, 0
    %v524 = vsel %vm471, %v456, 0
    %v527 = vsel %vm471, %v457, 0
    %v530 = vsel %vm471, %v458, 0
    %v533 = vsel %vm471, %v459, 0
    %v536 = vsel %vm471, %v460, 0
    %v539 = vsel %vm471, %v461, 0
    %v542 = vsel %vm471, %v462, 0
    %v545 = vsel %vm471, %v463, 0
    %v548 = vsel %vm471, %v464, 0
    %v551 = vsel %vm471, %v465, 0
    %v554 = vsel %vm471, %v466, 0
    %v557 = vsel %vm471, %v467, 0
    %v560 = vsel %vm471, %v468, 0
    %v563 = vsel %vm471, %v469, 0
    %v566 = vsel %vm471, %v470, 0
    %568 = vmatpush.msra.mxu0 0.0
    %569 = vmatpush.msra.mxu0 0.0
    %570 = vmatpush.msra.mxu0 0.0
    %571 = vmatpush.msra.mxu0 0.0
    %572 = vmatpush.msra.mxu0 0.0
    %573 = vmatpush.msra.mxu0 0.0
    %574 = vmatpush.msra.mxu0 0.0
    %575 = vmatpush.msra.mxu0 0.0
    %576 = vmatpush.msra.mxu0 0.0
    %577 = vmatpush.msra.mxu0 0.0
    %578 = vmatpush.msra.mxu0 0.0
    %579 = vmatpush.msra.mxu0 0.0
    %580 = vmatpush.msra.mxu0 0.0
    %581 = vmatpush.msra.mxu0 0.0
    %582 = vmatpush.msra.mxu0 0.0
    %583 = vmatpush.msra.mxu0 %v329
    %584 = vmatmul.f32.gmra.mxu0 %v473
    %v585 = vpop.f32.mrf.mxu0
    %v586 = vadd.f32 0.0, %v585
    %587 = vmatmul.f32.gmra.mxu0 %v476
    %v588 = vpop.f32.mrf.mxu0
    %v589 = vadd.f32 0.0, %v588
    %590 = vmatmul.f32.gmra.mxu0 %v479
    %v591 = vpop.f32.mrf.mxu0
    %v592 = vadd.f32 0.0, %v591
    %593 = vmatmul.f32.gmra.mxu0 %v482
    %v594 = vpop.f32.mrf.mxu0
    %v595 = vadd.f32 0.0, %v594
    %596 = vmatmul.f32.gmra.mxu0 %v485
    %v597 = vpop.f32.mrf.mxu0
    %v598 = vadd.f32 0.0, %v597
    %599 = vmatmul.f32.gmra.mxu0 %v488
    %v600 = vpop.f32.mrf.mxu0
    %v601 = vadd.f32 0.0, %v600
    %602 = vmatmul.f32.gmra.mxu0 %v491
    %v603 = vpop.f32.mrf.mxu0
    %v604 = vadd.f32 0.0, %v603
    %605 = vmatmul.f32.gmra.mxu0 %v494
    %v606 = vpop.f32.mrf.mxu0
    %v607 = vadd.f32 0.0, %v606
    %608 = vmatmul.f32.gmra.mxu0 %v497
    %v609 = vpop.f32.mrf.mxu0
    %v610 = vadd.f32 0.0, %v609
    %611 = vmatmul.f32.gmra.mxu0 %v500
    %v612 = vpop.f32.mrf.mxu0
    %v613 = vadd.f32 0.0, %v612
    %614 = vmatmul.f32.gmra.mxu0 %v503
    %v615 = vpop.f32.mrf.mxu0
    %v616 = vadd.f32 0.0, %v615
    %617 = vmatmul.f32.gmra.mxu0 %v506
    %v618 = vpop.f32.mrf.mxu0
    %v619 = vadd.f32 0.0, %v618
    %620 = vmatmul.f32.gmra.mxu0 %v509
    %v621 = vpop.f32.mrf.mxu0
    %v622 = vadd.f32 0.0, %v621
    %623 = vmatmul.f32.gmra.mxu0 %v512
    %v624 = vpop.f32.mrf.mxu0
    %v625 = vadd.f32 0.0, %v624
    %626 = vmatmul.f32.gmra.mxu0 %v515
    %v627 = vpop.f32.mrf.mxu0
    %v628 = vadd.f32 0.0, %v627
    %629 = vmatmul.f32.gmra.mxu0 %v518
    %v630 = vpop.f32.mrf.mxu0
    %v631 = vadd.f32 0.0, %v630
    %632 = vmatmul.f32.gmra.mxu0 %v521
    %v633 = vpop.f32.mrf.mxu0
    %v634 = vadd.f32 0.0, %v633
    %635 = vmatmul.f32.gmra.mxu0 %v524
    %v636 = vpop.f32.mrf.mxu0
    %v637 = vadd.f32 0.0, %v636
    %638 = vmatmul.f32.gmra.mxu0 %v527
    %v639 = vpop.f32.mrf.mxu0
    %v640 = vadd.f32 0.0, %v639
    %641 = vmatmul.f32.gmra.mxu0 %v530
    %v642 = vpop.f32.mrf.mxu0
    %v643 = vadd.f32 0.0, %v642
    %644 = vmatmul.f32.gmra.mxu0 %v533
    %v645 = vpop.f32.mrf.mxu0
    %v646 = vadd.f32 0.0, %v645
    %647 = vmatmul.f32.gmra.mxu0 %v536
    %v648 = vpop.f32.mrf.mxu0
    %v649 = vadd.f32 0.0, %v648
    %650 = vmatmul.f32.gmra.mxu0 %v539
    %v651 = vpop.f32.mrf.mxu0
    %v652 = vadd.f32 0.0, %v651
    %653 = vmatmul.f32.gmra.mxu0 %v542
    %v654 = vpop.f32.mrf.mxu0
    %v655 = vadd.f32 0.0, %v654
    %656 = vmatmul.f32.gmra.mxu0 %v545
    %v657 = vpop.f32.mrf.mxu0
    %v658 = vadd.f32 0.0, %v657
    %659 = vmatmul.f32.gmra.mxu0 %v548
    %v660 = vpop.f32.mrf.mxu0
    %v661 = vadd.f32 0.0, %v660
    %662 = vmatmul.f32.gmra.mxu0 %v551
    %v663 = vpop.f32.mrf.mxu0
    %v664 = vadd.f32 0.0, %v663
    %665 = vmatmul.f32.gmra.mxu0 %v554
    %v666 = vpop.f32.mrf.mxu0
    %v667 = vadd.f32 0.0, %v666
    %668 = vmatmul.f32.gmra.mxu0 %v557
    %v669 = vpop.f32.mrf.mxu0
    %v670 = vadd.f32 0.0, %v669
    %671 = vmatmul.f32.gmra.mxu0 %v560
    %v672 = vpop.f32.mrf.mxu0
    %v673 = vadd.f32 0.0, %v672
    %674 = vmatmul.f32.gmra.mxu0 %v563
    %v675 = vpop.f32.mrf.mxu0
    %v676 = vadd.f32 0.0, %v675
    %677 = vmatmul.f32.gmra.mxu0 %v566
    %v678 = vpop.f32.mrf.mxu0
    %v679 = vadd.f32 0.0, %v678
    %680 = vdwg.mxu0
    %v681 = vpack.c.bf16 %v589, %v586
    %v682 = vpack.c.bf16 %v595, %v592
    %v683 = vpack.c.bf16 %v601, %v598
    %v684 = vpack.c.bf16 %v607, %v604
    %v685 = vpack.c.bf16 %v613, %v610
    %v686 = vpack.c.bf16 %v619, %v616
    %v687 = vpack.c.bf16 %v625, %v622
    %v688 = vpack.c.bf16 %v631, %v628
    %v689 = vpack.c.bf16 %v637, %v634
    %v690 = vpack.c.bf16 %v643, %v640
    %v691 = vpack.c.bf16 %v649, %v646
    %v692 = vpack.c.bf16 %v655, %v652
    %v693 = vpack.c.bf16 %v661, %v658
    %v694 = vpack.c.bf16 %v667, %v664
    %v695 = vpack.c.bf16 %v673, %v670
    %v696 = vpack.c.bf16 %v679, %v676
    %697 = vmatpush.bf16.msra.mxu0 %v688
    %698 = vmatpush.bf16.msra.mxu0 %v687
    %699 = vmatpush.bf16.msra.mxu0 %v686
    %700 = vmatpush.bf16.msra.mxu0 %v685
    %701 = vmatpush.bf16.msra.mxu0 %v684
    %702 = vmatpush.bf16.msra.mxu0 %v683
    %703 = vmatpush.bf16.msra.mxu0 %v682
    %704 = vmatpush.bf16.msra.mxu0 %v681
    %705 = vmatmul.bf16.gmra.mxu0 %v212
    %v706 = vpop.f32.mrf.mxu0
    %v707 = vadd.f32 0.0, %v706
    %v708 = vpop.f32.mrf.mxu0
    %v709 = vadd.f32 0.0, %v708
    %710 = vmatmul.bf16.gmra.mxu0 %v214
    %v711 = vpop.f32.mrf.mxu0
    %v712 = vadd.f32 0.0, %v711
    %v713 = vpop.f32.mrf.mxu0
    %v714 = vadd.f32 0.0, %v713
    %715 = vmatmul.bf16.gmra.mxu0 %v216
    %v716 = vpop.f32.mrf.mxu0
    %v717 = vadd.f32 0.0, %v716
    %v718 = vpop.f32.mrf.mxu0
    %v719 = vadd.f32 0.0, %v718
    %720 = vmatmul.bf16.gmra.mxu0 %v218
    %v721 = vpop.f32.mrf.mxu0
    %v722 = vadd.f32 0.0, %v721
    %v723 = vpop.f32.mrf.mxu0
    %v724 = vadd.f32 0.0, %v723
    %725 = vmatmul.bf16.gmra.mxu0 %v220
    %v726 = vpop.f32.mrf.mxu0
    %v727 = vadd.f32 0.0, %v726
    %v728 = vpop.f32.mrf.mxu0
    %v729 = vadd.f32 0.0, %v728
    %730 = vmatmul.bf16.gmra.mxu0 %v222
    %v731 = vpop.f32.mrf.mxu0
    %v732 = vadd.f32 0.0, %v731
    %v733 = vpop.f32.mrf.mxu0
    %v734 = vadd.f32 0.0, %v733
    %735 = vmatmul.bf16.gmra.mxu0 %v224
    %v736 = vpop.f32.mrf.mxu0
    %v737 = vadd.f32 0.0, %v736
    %v738 = vpop.f32.mrf.mxu0
    %v739 = vadd.f32 0.0, %v738
    %740 = vmatmul.bf16.gmra.mxu0 %v226
    %v741 = vpop.f32.mrf.mxu0
    %v742 = vadd.f32 0.0, %v741
    %v743 = vpop.f32.mrf.mxu0
    %v744 = vadd.f32 0.0, %v743
    %745 = vmatmul.bf16.gmra.mxu0 %v228
    %v746 = vpop.f32.mrf.mxu0
    %v747 = vadd.f32 0.0, %v746
    %v748 = vpop.f32.mrf.mxu0
    %v749 = vadd.f32 0.0, %v748
    %750 = vmatmul.bf16.gmra.mxu0 %v230
    %v751 = vpop.f32.mrf.mxu0
    %v752 = vadd.f32 0.0, %v751
    %v753 = vpop.f32.mrf.mxu0
    %v754 = vadd.f32 0.0, %v753
    %755 = vmatmul.bf16.gmra.mxu0 %v232
    %v756 = vpop.f32.mrf.mxu0
    %v757 = vadd.f32 0.0, %v756
    %v758 = vpop.f32.mrf.mxu0
    %v759 = vadd.f32 0.0, %v758
    %760 = vmatmul.bf16.gmra.mxu0 %v234
    %v761 = vpop.f32.mrf.mxu0
    %v762 = vadd.f32 0.0, %v761
    %v763 = vpop.f32.mrf.mxu0
    %v764 = vadd.f32 0.0, %v763
    %765 = vmatmul.bf16.gmra.mxu0 %v236
    %v766 = vpop.f32.mrf.mxu0
    %v767 = vadd.f32 0.0, %v766
    %v768 = vpop.f32.mrf.mxu0
    %v769 = vadd.f32 0.0, %v768
    %770 = vmatmul.bf16.gmra.mxu0 %v238
    %v771 = vpop.f32.mrf.mxu0
    %v772 = vadd.f32 0.0, %v771
    %v773 = vpop.f32.mrf.mxu0
    %v774 = vadd.f32 0.0, %v773
    %775 = vmatmul.bf16.gmra.mxu0 %v240
    %v776 = vpop.f32.mrf.mxu0
    %v777 = vadd.f32 0.0, %v776
    %v778 = vpop.f32.mrf.mxu0
    %v779 = vadd.f32 0.0, %v778
    %780 = vmatmul.bf16.gmra.mxu0 %v242
    %v781 = vpop.f32.mrf.mxu0
    %v782 = vadd.f32 0.0, %v781
    %v783 = vpop.f32.mrf.mxu0
    %v784 = vadd.f32 0.0, %v783
    %785 = vdwg.mxu0
    %786 = vmatpush.bf16.msra.mxu0 %v696
    %787 = vmatpush.bf16.msra.mxu0 %v695
    %788 = vmatpush.bf16.msra.mxu0 %v694
    %789 = vmatpush.bf16.msra.mxu0 %v693
    %790 = vmatpush.bf16.msra.mxu0 %v692
    %791 = vmatpush.bf16.msra.mxu0 %v691
    %792 = vmatpush.bf16.msra.mxu0 %v690
    %793 = vmatpush.bf16.msra.mxu0 %v689
    %794 = vmatmul.bf16.gmra.mxu0 %v213
    %v795 = vpop.f32.mrf.mxu0
    %v796 = vadd.f32 %v707, %v795
    %v797 = vpop.f32.mrf.mxu0
    %v798 = vadd.f32 %v709, %v797
    %799 = vmatmul.bf16.gmra.mxu0 %v215
    %v800 = vpop.f32.mrf.mxu0
    %v801 = vadd.f32 %v712, %v800
    %v802 = vpop.f32.mrf.mxu0
    %v803 = vadd.f32 %v714, %v802
    %804 = vmatmul.bf16.gmra.mxu0 %v217
    %v805 = vpop.f32.mrf.mxu0
    %v806 = vadd.f32 %v717, %v805
    %v807 = vpop.f32.mrf.mxu0
    %v808 = vadd.f32 %v719, %v807
    %809 = vmatmul.bf16.gmra.mxu0 %v219
    %v810 = vpop.f32.mrf.mxu0
    %v811 = vadd.f32 %v722, %v810
    %v812 = vpop.f32.mrf.mxu0
    %v813 = vadd.f32 %v724, %v812
    %814 = vmatmul.bf16.gmra.mxu0 %v221
    %v815 = vpop.f32.mrf.mxu0
    %v816 = vadd.f32 %v727, %v815
    %v817 = vpop.f32.mrf.mxu0
    %v818 = vadd.f32 %v729, %v817
    %819 = vmatmul.bf16.gmra.mxu0 %v223
    %v820 = vpop.f32.mrf.mxu0
    %v821 = vadd.f32 %v732, %v820
    %v822 = vpop.f32.mrf.mxu0
    %v823 = vadd.f32 %v734, %v822
    %824 = vmatmul.bf16.gmra.mxu0 %v225
    %v825 = vpop.f32.mrf.mxu0
    %v826 = vadd.f32 %v737, %v825
    %v827 = vpop.f32.mrf.mxu0
    %v828 = vadd.f32 %v739, %v827
    %829 = vmatmul.bf16.gmra.mxu0 %v227
    %v830 = vpop.f32.mrf.mxu0
    %v831 = vadd.f32 %v742, %v830
    %v832 = vpop.f32.mrf.mxu0
    %v833 = vadd.f32 %v744, %v832
    %834 = vmatmul.bf16.gmra.mxu0 %v229
    %v835 = vpop.f32.mrf.mxu0
    %v836 = vadd.f32 %v747, %v835
    %v837 = vpop.f32.mrf.mxu0
    %v838 = vadd.f32 %v749, %v837
    %839 = vmatmul.bf16.gmra.mxu0 %v231
    %v840 = vpop.f32.mrf.mxu0
    %v841 = vadd.f32 %v752, %v840
    %v842 = vpop.f32.mrf.mxu0
    %v843 = vadd.f32 %v754, %v842
    %844 = vmatmul.bf16.gmra.mxu0 %v233
    %v845 = vpop.f32.mrf.mxu0
    %v846 = vadd.f32 %v757, %v845
    %v847 = vpop.f32.mrf.mxu0
    %v848 = vadd.f32 %v759, %v847
    %849 = vmatmul.bf16.gmra.mxu0 %v235
    %v850 = vpop.f32.mrf.mxu0
    %v851 = vadd.f32 %v762, %v850
    %v852 = vpop.f32.mrf.mxu0
    %v853 = vadd.f32 %v764, %v852
    %854 = vmatmul.bf16.gmra.mxu0 %v237
    %v855 = vpop.f32.mrf.mxu0
    %v856 = vadd.f32 %v767, %v855
    %v857 = vpop.f32.mrf.mxu0
    %v858 = vadd.f32 %v769, %v857
    %859 = vmatmul.bf16.gmra.mxu0 %v239
    %v860 = vpop.f32.mrf.mxu0
    %v861 = vadd.f32 %v772, %v860
    %v862 = vpop.f32.mrf.mxu0
    %v863 = vadd.f32 %v774, %v862
    %864 = vmatmul.bf16.gmra.mxu0 %v241
    %v865 = vpop.f32.mrf.mxu0
    %v866 = vadd.f32 %v777, %v865
    %v867 = vpop.f32.mrf.mxu0
    %v868 = vadd.f32 %v779, %v867
    %869 = vmatmul.bf16.gmra.mxu0 %v243
    %v870 = vpop.f32.mrf.mxu0
    %v871 = vadd.f32 %v782, %v870
    %v872 = vpop.f32.mrf.mxu0
    %v873 = vadd.f32 %v784, %v872
    %874 = vdwg.mxu0
    %875 = vst [vmem:[#allocation10] sm:$0xff] %v796
    %876 = vst [vmem:[#allocation10 + $0x8] sm:$0xff] %v798
    %877 = vst [vmem:[#allocation10 + $0x10] sm:$0xff] %v801
    %878 = vst [vmem:[#allocation10 + $0x18] sm:$0xff] %v803
    %879 = vst [vmem:[#allocation10 + $0x20] sm:$0xff] %v806
    %880 = vst [vmem:[#allocation10 + $0x28] sm:$0xff] %v808
    %881 = vst [vmem:[#allocation10 + $0x30] sm:$0xff] %v811
    %882 = vst [vmem:[#allocation10 + $0x38] sm:$0xff] %v813
    %883 = vst [vmem:[#allocation10 + $0x40] sm:$0xff] %v816
    %884 = vst [vmem:[#allocation10 + $0x48] sm:$0xff] %v818
    %885 = vst [vmem:[#allocation10 + $0x50] sm:$0xff] %v821
    %886 = vst [vmem:[#allocation10 + $0x58] sm:$0xff] %v823
    %887 = vst [vmem:[#allocation10 + $0x60] sm:$0xff] %v826
    %888 = vst [vmem:[#allocation10 + $0x68] sm:$0xff] %v828
    %889 = vst [vmem:[#allocation10 + $0x70] sm:$0xff] %v831
    %890 = vst [vmem:[#allocation10 + $0x78] sm:$0xff] %v833
    %891 = vst [vmem:[#allocation10 + $0x80] sm:$0xff] %v836
    %892 = vst [vmem:[#allocation10 + $0x88] sm:$0xff] %v838
    %893 = vst [vmem:[#allocation10 + $0x90] sm:$0xff] %v841
    %894 = vst [vmem:[#allocation10 + $0x98] sm:$0xff] %v843
    %895 = vst [vmem:[#allocation10 + $0xa0] sm:$0xff] %v846
    %896 = vst [vmem:[#allocation10 + $0xa8] sm:$0xff] %v848
    %897 = vst [vmem:[#allocation10 + $0xb0] sm:$0xff] %v851
    %898 = vst [vmem:[#allocation10 + $0xb8] sm:$0xff] %v853
    %899 = vst [vmem:[#allocation10 + $0xc0] sm:$0xff] %v856
    %900 = vst [vmem:[#allocation10 + $0xc8] sm:$0xff] %v858
    %901 = vst [vmem:[#allocation10 + $0xd0] sm:$0xff] %v861
    %902 = vst [vmem:[#allocation10 + $0xd8] sm:$0xff] %v863
    %903 = vst [vmem:[#allocation10 + $0xe0] sm:$0xff] %v866
    %904 = vst [vmem:[#allocation10 + $0xe8] sm:$0xff] %v868
    %905 = vst [vmem:[#allocation10 + $0xf0] sm:$0xff] %v871
    %906 = vst [vmem:[#allocation10 + $0xf8] sm:$0xff] %v873
    // Predicated region
    $region38: #{tpu_custom_call.1} parent=1 // pred_check
      _
    $region39: #{tpu_custom_call.1} parent=1 // pred_check_branch
      %908 = sbr.rel (0) target = $region41
    $region40: #{tpu_custom_call.1} parent=1 // pred_region
      %910 = vsyncadd [#allocation4], 0
      %s911 = sshll.u32 [#allocation10], 4
      %s912 = int_to_ptr.vmem [resolvable:$true] %s911
      %s913 = sshll.u32 %s5, 4
      %s914 = int_to_ptr.hbm [resolvable:$true] %s913
      %919 = dma.vmem_to_hbm [thread:$0]  %s912, 4096, %s914, [#allocation4], 128, 128, 8
    $region41: #{tpu_custom_call.1} parent=1 // pred_fallthru
      _
    // Predicated region
    $region42: #{tpu_custom_call.1} parent=1 // pred_check
      _
    $region43: #{tpu_custom_call.1} parent=1 // pred_check_branch
      %921 = sbr.rel (0) target = $region45
    $region44: #{tpu_custom_call.1} parent=1 // pred_region
      %923 = dma.done [#allocation4], 4096
    $region45: #{tpu_custom_call.1} parent=1 // pred_fallthru
      _
    %924 = vsyncpa [#allocation3], 1
    %925 = vsyncpa [#allocation8], 1
    %926 = vsyncpa [#allocation4], 1
    %927 = vsyncpa [#allocation5], 1

</llo_original>
